<compile_context>
chip_gen: v7x
topology: tpu7x:2x2x1
jax: 0.10.0
libtpu: 0.0.40
codegen_flags: <defaults>
</compile_context>

<pallas_src>
import jax
import jax.numpy as jnp
from jax.experimental import pallas as pl
from jax.experimental.pallas import tpu as pltpu


_IMAGENET_MEAN = (0.485, 0.456, 0.406)
_IMAGENET_STD = (0.229, 0.224, 0.225)


def _normalize_kernel(scale_ref, shift_ref, x_ref, o_ref):
    # scale_ref / shift_ref: VMEM (row_block, 1) f32 columns (broadcast over lanes)
    # x_ref / o_ref:         VMEM (row_block, col_block) tiles
    s = scale_ref[...]
    b = shift_ref[...]
    x = x_ref[...].astype(jnp.float32)
    o_ref[...] = (x * s + b).astype(o_ref.dtype)


def _pick_col_block(hw, max_cols=8192):
    """Lane-dense column block: full dim if small, else a 128-multiple."""
    if hw <= max_cols:
        return hw  # block == full array dim: always a legal block shape
    # Prefer a multiple of 128 that evenly divides hw (no masked partial stores).
    cb = (max_cols // 128) * 128
    while cb >= 128:
        if hw % cb == 0:
            return cb
        cb -= 128
    # Fall back: non-dividing 128-multiple (last block is padded/masked).
    return (max_cols // 128) * 128


def _pick_row_block(r, col_block, elem_bytes, target_bytes=2 * 1024 * 1024):
    """Sublane row block: multiple of 8 (or full dim), ~target_bytes per buffer."""
    budget_rows = max(1, target_bytes // (col_block * elem_bytes))
    if r <= budget_rows or r <= 8:
        return r  # full dim: always legal
    rb = (min(budget_rows, r) // 8) * 8
    return max(rb, 8)


def imagenet_normalize(x, mean=_IMAGENET_MEAN, std=_IMAGENET_STD, out_dtype=None):
    """Pallas TPU implementation of ImageNetNormalizer.forward.

    x: (N, C, H, W), NCHW layout (matches PyTorch).
    Returns (x - mean[None, :, None, None]) / std[None, :, None, None].
    """
    N, C, H, W = x.shape
    out_dtype = x.dtype if out_dtype is None else jnp.dtype(out_dtype)
    R, HW = N * C, H * W

    mean_arr = jnp.asarray(mean, jnp.float32)
    std_arr = jnp.asarray(std, jnp.float32)
    assert mean_arr.shape == (C,) and std_arr.shape == (C,)

    # Fold (x - mean) / std into a single multiply-add: x * inv_std + bias.
    inv_std = 1.0 / std_arr
    bias = -mean_arr * inv_std
    # One row of the flattened view per (n, c) image plane.
    scale_rows = jnp.tile(inv_std, N).reshape(R, 1)
    shift_rows = jnp.tile(bias, N).reshape(R, 1)

    # Lane-dense flattened view: rows = N*C planes, cols = H*W pixels.
    x2 = x.reshape(R, HW)

    elem_bytes = x2.dtype.itemsize
    col_block = _pick_col_block(HW)
    row_block = _pick_row_block(R, col_block, elem_bytes)

    grid = (pl.cdiv(R, row_block), pl.cdiv(HW, col_block))

    cost = pl.CostEstimate(
        flops=2 * R * HW,
        transcendentals=0,
        bytes_accessed=R * HW * (elem_bytes + out_dtype.itemsize) + 2 * R * 4,
    )

    out2 = pl.pallas_call(
        _normalize_kernel,
        out_shape=jax.ShapeDtypeStruct((R, HW), out_dtype),
        grid=grid,
        in_specs=[
            pl.BlockSpec((row_block, 1), lambda i, j: (i, 0)),
            pl.BlockSpec((row_block, 1), lambda i, j: (i, 0)),
            pl.BlockSpec((row_block, col_block), lambda i, j: (i, j)),
        ],
        out_specs=pl.BlockSpec((row_block, col_block), lambda i, j: (i, j)),
        compiler_params=pltpu.CompilerParams(
            dimension_semantics=("parallel", "parallel"),
            vmem_limit_bytes=32 * 1024 * 1024,
        ),
        cost_estimate=cost,
    )(scale_rows, shift_rows, x2)

    return out2.reshape(N, C, H, W)


def _reference(x, mean=_IMAGENET_MEAN, std=_IMAGENET_STD):
    m = jnp.asarray(mean, jnp.float32)
    s = jnp.asarray(std, jnp.float32)
    return (x - m[None, :, None, None]) / s[None, :, None, None]


if __name__ == "__main__":
    key = jax.random.PRNGKey(0)

    # Small deterministic test shape (ImageNet normalizer implies C=3).
    N, C, H, W = 2, 3, 16, 16
    x_small = jax.random.uniform(key, (N, C, H, W), dtype=jnp.float32)
    out_small = jax.block_until_ready(imagenet_normalize(x_small))
    ref_small = _reference(x_small)
    assert jnp.allclose(out_small, ref_small, atol=1e-5, rtol=1e-5), "small mismatch"

    # Realistic ImageNet-sized plane to exercise the multi-block (lane-dense) path.
    x_big = jax.random.uniform(jax.random.PRNGKey(1), (1, 3, 224, 224), dtype=jnp.float32)
    out_big = jax.block_until_ready(imagenet_normalize(x_big))
    ref_big = _reference(x_big)
    assert jnp.allclose(out_big, ref_big, atol=1e-5, rtol=1e-5), "224x224 mismatch"

    print("KERNEL_OK")
</pallas_src>

<mosaic_0001>
module attributes {stable_mosaic.version = 11 : i64} {
  func.func @_normalize_kernel(%arg0: i32, %arg1: i32, %arg2: memref<6x1xf32, #tpu.memory_space<vmem>>, %arg3: memref<6x1xf32, #tpu.memory_space<vmem>>, %arg4: memref<6x256xf32, #tpu.memory_space<vmem>>, %arg5: memref<6x256xf32, #tpu.memory_space<vmem>>) attributes {dimension_semantics = [#tpu.dimension_semantics<parallel>, #tpu.dimension_semantics<parallel>], iteration_bounds = array<i64: 1, 1>, scalar_prefetch = 0 : i64, scratch_operands = 0 : i64, tpu.core_type = #tpu.core_type<tc>, window_params = [{transform_indices = @transform_0, window_bounds = array<i64: 6, 1>}, {transform_indices = @transform_1, window_bounds = array<i64: 6, 1>}, {transform_indices = @transform_2, window_bounds = array<i64: 6, 256>}, {transform_indices = @transform_3, window_bounds = array<i64: 6, 256>}]} {
    %c0 = arith.constant 0 : index
    %c0_0 = arith.constant 0 : index
    %0 = vector.load %arg2[%c0, %c0_0] : memref<6x1xf32, #tpu.memory_space<vmem>>, vector<6x1xf32>
    %c0_1 = arith.constant 0 : index
    %c0_2 = arith.constant 0 : index
    %1 = vector.load %arg3[%c0_1, %c0_2] : memref<6x1xf32, #tpu.memory_space<vmem>>, vector<6x1xf32>
    %c0_3 = arith.constant 0 : index
    %c0_4 = arith.constant 0 : index
    %2 = vector.load %arg4[%c0_3, %c0_4] : memref<6x256xf32, #tpu.memory_space<vmem>>, vector<6x256xf32>
    %3 = vector.broadcast %0 : vector<6x1xf32> to vector<6x256xf32>
    %4 = arith.mulf %2, %3 : vector<6x256xf32>
    %5 = vector.broadcast %1 : vector<6x1xf32> to vector<6x256xf32>
    %6 = arith.addf %4, %5 : vector<6x256xf32>
    %c0_5 = arith.constant 0 : index
    %c0_6 = arith.constant 0 : index
    %7 = vector.load %arg5[%c0_5, %c0_6] : memref<6x256xf32, #tpu.memory_space<vmem>>, vector<6x256xf32>
    tpu.vector_store %arg5[%c0_5, %c0_6], %6 {strides = array<i32>} : memref<6x256xf32, #tpu.memory_space<vmem>>, vector<6x256xf32>,
    return
  }
  func.func @transform_0(%arg0: i32, %arg1: i32) -> (i32, i32) {
    %c0_i32 = arith.constant 0 : i32
    %c0_i32_0 = arith.constant 0 : i32
    return %arg0, %c0_i32 : i32, i32
  }
  func.func @transform_1(%arg0: i32, %arg1: i32) -> (i32, i32) {
    %c0_i32 = arith.constant 0 : i32
    %c0_i32_0 = arith.constant 0 : i32
    return %arg0, %c0_i32 : i32, i32
  }
  func.func @transform_2(%arg0: i32, %arg1: i32) -> (i32, i32) {
    %c0_i32 = arith.constant 0 : i32
    return %arg0, %arg1 : i32, i32
  }
  func.func @transform_3(%arg0: i32, %arg1: i32) -> (i32, i32) {
    %c0_i32 = arith.constant 0 : i32
    return %arg0, %arg1 : i32, i32
  }
}

</mosaic_0001>

<llo_original>
// kernel: tpu_custom_call.1
$region0: #{tpu_custom_call.1}
  #allocation0 [shape = 'u32[]', space=smem, size = 0x4, offset = 0x4, fixed_abs, tag = 'smem constant byte address 0x4 - core index']
  #allocation1 [shape = 'u32[144,128]{1,0:T(1,128)}', space=vmem, size = 0x12000, scoped, tag = 'internal scratch']
  %s0 = inlined_call_operand.vmem [shape: f32[6,1], index: 0, kind: input, shape index: {}]
  %s1 = inlined_call_operand.vmem [shape: f32[6,1], index: 1, kind: input, shape index: {}]
  %s2 = inlined_call_operand.vmem [shape: f32[6,256], index: 2, kind: input, shape index: {}]
  %s3 = inlined_call_operand.hbm [shape: f32[6,256], index: 3, kind: output, shape index: {}]
  %s4 = sld [smem:[#allocation0]]
  $region22: #{tpu_custom_call.1} parent=0
    _
  %s6 = ssub.s32 1, %s4
  %s7 = scalar_select 0, %s6, %s4
  $region1: #{tpu_custom_call.1} parent=0
    #allocation2 [shape = 'u8[8192]{0}', space=vmem, size = 0x2000, scoped, tag = 'output window, operand 0, single buffered']
    #allocation3 [shape = 's32[1]{0}', space=sflag, size = 0x4, scoped, tag = 'scoped memory for tpu_custom_call.1']
    %8 = vsyncpa [#allocation3], 0
    // Predicated region
    $region2: #{tpu_custom_call.1} parent=1 // pred_check
      _
    $region3: #{tpu_custom_call.1} parent=1 // pred_check_branch
      %10 = sbr.rel (0) target = $region5
    $region4: #{tpu_custom_call.1} parent=1 // pred_region
      _
    $region5: #{tpu_custom_call.1} parent=1 // pred_fallthru
      _
    // Predicated region
    $region6: #{tpu_custom_call.1} parent=1 // pred_check
      _
    $region7: #{tpu_custom_call.1} parent=1 // pred_check_branch
      %12 = sbr.rel (0) target = $region9
    $region8: #{tpu_custom_call.1} parent=1 // pred_region
      _
    $region9: #{tpu_custom_call.1} parent=1 // pred_fallthru
      _
    // Predicated region
    $region10: #{tpu_custom_call.1} parent=1 // pred_check
      _
    $region11: #{tpu_custom_call.1} parent=1 // pred_check_branch
      %14 = sbr.rel (0) target = $region13
    $region12: #{tpu_custom_call.1} parent=1 // pred_region
      _
    $region13: #{tpu_custom_call.1} parent=1 // pred_fallthru
      _
    %v15 = vld [vmem:[%s0] sm:$0x3f]
    %v16 = vld [vmem:[%s1] sm:$0x3f]
    %v17 = vld [vmem:[%s2] sm:$0x3f]
    %v18 = vld [vmem:[%s2 + $0x8] sm:$0x3f]
    %20 = vset.pattern.permute.xlu0 0
    %21 = vperm.xlu0 %20, %v15
    %v22 = vpop.permute.xlu0 %21
    %v24 = vmul.f32 %v17, %v22
    %v25 = vmul.f32 %v18, %v22
    %27 = vset.pattern.permute.xlu0 0
    %28 = vperm.xlu0 %27, %v16
    %v29 = vpop.permute.xlu0 %28
    %v31 = vadd.f32 %v24, %v29
    %v32 = vadd.f32 %v25, %v29
    %33 = vst [vmem:[#allocation2] sm:$0x3f] %v31
    %34 = vst [vmem:[#allocation2 + $0x8] sm:$0x3f] %v32
    // Predicated region
    $region14: #{tpu_custom_call.1} parent=1 // pred_check
      _
    $region15: #{tpu_custom_call.1} parent=1 // pred_check_branch
      %36 = sbr.rel (0) target = $region17
    $region16: #{tpu_custom_call.1} parent=1 // pred_region
      %s38 = ssub.s32 256, 256
      %39 = vsyncadd [#allocation3], %s38
      %s41 = sshll.u32 [#allocation2], 4
      %s42 = int_to_ptr.vmem [resolvable:$true] %s41
      %44 = dma.vmem_to_hbm [thread:$0]  %s42, 256, %s3, [#allocation3]
    $region17: #{tpu_custom_call.1} parent=1 // pred_fallthru
      _
    // Predicated region
    $region18: #{tpu_custom_call.1} parent=1 // pred_check
      _
    $region19: #{tpu_custom_call.1} parent=1 // pred_check_branch
      %46 = sbr.rel (0) target = $region21
    $region20: #{tpu_custom_call.1} parent=1 // pred_region
      %47 = dma.done [#allocation3], 256
    $region21: #{tpu_custom_call.1} parent=1 // pred_fallthru
      _
    %48 = vsyncpa [#allocation3], 1

</llo_original>
